<compile_context>
chip_gen: v7x
topology: tpu7x:2x2x1
jax: 0.10.0
libtpu: 0.0.40
codegen_flags: <defaults>
</compile_context>

<pallas_src>
import math

import jax
import jax.numpy as jnp
import numpy as np
from jax.experimental import pallas as pl
from jax.experimental.pallas import tpu as pltpu

_SQRT_HALF = 1.0 / math.sqrt(2.0)
_LN_EPS = 1e-5  # torch.nn.LayerNorm default


def _round_up(n: int, m: int) -> int:
    return ((n + m - 1) // m) * m


def _erf_approx(x):
    """Abramowitz & Stegun 7.1.26 rational erf approximation (|err| < 1.5e-7)."""
    p = 0.3275911
    a1, a2, a3, a4, a5 = 0.254829592, -0.284496736, 1.421413741, -1.453152027, 1.061405429
    sign = jnp.where(x >= 0.0, 1.0, -1.0)
    ax = jnp.abs(x)
    t = 1.0 / (1.0 + p * ax)
    poly = ((((a5 * t + a4) * t + a3) * t + a2) * t + a1) * t
    return sign * (1.0 - poly * jnp.exp(-ax * ax))


def _gelu(x):
    """erf-based GELU, matching torch.nn.GELU() (exact form) to ~1e-7."""
    # TODO(synk): lax.erf has no Pallas/Mosaic lowering; A&S approximation used instead.
    return 0.5 * x * (1.0 + _erf_approx(x * _SQRT_HALF))


def _model_kernel(x_ref, t_ref, pos_ref, w_in_ref, b_in_ref,
                  w1_ref, b1_ref, w2_ref, b2_ref, gamma_ref, beta_ref,
                  w_out_ref, b_out_ref, out_ref):
    tb = x_ref.shape[0]
    maxlen = pos_ref.shape[0]
    n_layers = w1_ref.shape[0]

    x = x_ref[...]                                   # (TB, 2)  f32
    t = t_ref[...]                                   # (TB, 1)  i32

    # --- positional-encoding gather as a one-hot matmul (MXU) -----------------
    col = jax.lax.broadcasted_iota(jnp.int32, (tb, maxlen), 1)
    onehot = (col == t).astype(jnp.float32)          # (TB, maxlen)
    emb = jnp.dot(onehot, pos_ref[...],
                  preferred_element_type=jnp.float32)  # (TB, D)

    # --- lin_in: (TB, 2) -> (TB, D), done on the VPU (K = 2 is tiny) ----------
    w_in = w_in_ref[...]                             # (2, D)
    h = (x[:, 0:1] * w_in[0:1, :] +
         x[:, 1:2] * w_in[1:2, :] + b_in_ref[...])   # (TB, D)

    # --- residual blocks (static unroll over a small n_layers) ---------------
    for l in range(n_layers):
        u = h + emb
        z = jnp.dot(u, w1_ref[l], preferred_element_type=jnp.float32) + b1_ref[l]
        a = _gelu(z)
        v = h + jnp.dot(a, w2_ref[l], preferred_element_type=jnp.float32) + b2_ref[l]
        mu = jnp.mean(v, axis=-1, keepdims=True)
        c = v - mu
        var = jnp.mean(c * c, axis=-1, keepdims=True)
        h = c * jax.lax.rsqrt(var + _LN_EPS) * gamma_ref[l] + beta_ref[l]

    # --- lin_out: (TB, D) -> (TB, 2) as two lane reductions + half-slice stores
    w_out = w_out_ref[...]                           # (2, D) (torch (out,in) layout)
    b_out = b_out_ref[...]                           # (1, 2)
    o0 = jnp.sum(h * w_out[0:1, :], axis=-1, keepdims=True) + b_out[0:1, 0:1]
    o1 = jnp.sum(h * w_out[1:2, :], axis=-1, keepdims=True) + b_out[0:1, 1:2]
    out_ref[:, 0:1] = o0.astype(out_ref.dtype)
    out_ref[:, 1:2] = o1.astype(out_ref.dtype)


def basic_discrete_time_model(params, x, t, *, block_b: int = 512):
    """x: (B, 2) f32, t: (B,) int32  ->  (B, 2) f32."""
    B = x.shape[0]
    D = params["w_in"].shape[1]
    L = params["w1"].shape[0]
    maxlen = params["pos_enc"].shape[0]

    TB = min(block_b, _round_up(B, 8))
    Bp = _round_up(B, TB)

    x = x.astype(jnp.float32)
    t = t.astype(jnp.int32)
    if Bp != B:
        x = jnp.pad(x, ((0, Bp - B), (0, 0)))
        t = jnp.pad(t, ((0, Bp - B),))
    t2 = t.reshape(Bp, 1)

    grid = (Bp // TB,)

    grid_spec = pltpu.PrefetchScalarGridSpec(
        num_scalar_prefetch=0,
        grid=grid,
        in_specs=[
            pl.BlockSpec((TB, 2), lambda i: (i, 0)),          # x
            pl.BlockSpec((TB, 1), lambda i: (i, 0)),          # t
            pl.BlockSpec((maxlen, D), lambda i: (0, 0)),      # pos_enc (resident)
            pl.BlockSpec((2, D), lambda i: (0, 0)),           # w_in
            pl.BlockSpec((1, D), lambda i: (0, 0)),           # b_in
            pl.BlockSpec((L, D, D), lambda i: (0, 0, 0)),     # w1 stack
            pl.BlockSpec((L, 1, D), lambda i: (0, 0, 0)),     # b1 stack
            pl.BlockSpec((L, D, D), lambda i: (0, 0, 0)),     # w2 stack
            pl.BlockSpec((L, 1, D), lambda i: (0, 0, 0)),     # b2 stack
            pl.BlockSpec((L, 1, D), lambda i: (0, 0, 0)),     # layernorm gamma
            pl.BlockSpec((L, 1, D), lambda i: (0, 0, 0)),     # layernorm beta
            pl.BlockSpec((2, D), lambda i: (0, 0)),           # w_out (torch layout)
            pl.BlockSpec((1, 2), lambda i: (0, 0)),           # b_out
        ],
        out_specs=pl.BlockSpec((TB, 2), lambda i: (i, 0)),
    )

    out = pl.pallas_call(
        _model_kernel,
        out_shape=jax.ShapeDtypeStruct((Bp, 2), jnp.float32),
        grid_spec=grid_spec,
        compiler_params=pltpu.CompilerParams(
            dimension_semantics=("parallel",)),   # v7x: split batch over both TCs
    )(x, t2, params["pos_enc"], params["w_in"], params["b_in"],
      params["w1"], params["b1"], params["w2"], params["b2"],
      params["gamma"], params["beta"], params["w_out"], params["b_out"])

    return out[:B]


def reference_forward(params, x, t):
    """Plain-JAX reference with the exact (erf) GELU of torch.nn.GELU()."""
    pp = jax.lax.Precision.HIGHEST
    h = jnp.dot(x, params["w_in"], precision=pp) + params["b_in"]
    emb = params["pos_enc"][t]
    for l in range(params["w1"].shape[0]):
        u = h + emb
        z = jnp.dot(u, params["w1"][l], precision=pp) + params["b1"][l]
        a = 0.5 * z * (1.0 + jax.scipy.special.erf(z * _SQRT_HALF))
        v = h + jnp.dot(a, params["w2"][l], precision=pp) + params["b2"][l]
        mu = jnp.mean(v, axis=-1, keepdims=True)
        var = jnp.mean((v - mu) ** 2, axis=-1, keepdims=True)
        h = (v - mu) / jnp.sqrt(var + _LN_EPS) * params["gamma"][l] + params["beta"][l]
    return jnp.dot(h, params["w_out"].T, precision=pp) + params["b_out"]


if __name__ == "__main__":
    d_model, n_layers, maxlen, min_freq = 128, 2, 512, 1e-4
    batch = 8

    key = jax.random.PRNGKey(0)
    ks = jax.random.split(key, 16)

    def _uniform(k, shape, fan_in):
        bound = 1.0 / math.sqrt(fan_in)
        return jax.random.uniform(k, shape, jnp.float32, -bound, bound)

    # Positional-encoding table, exactly as PositionalEncoding._get_pos_enc.
    position = np.arange(maxlen)
    freqs = min_freq ** (2 * (np.arange(d_model) // 2) / d_model)
    pe = position[:, None] * freqs[None]
    pe[:, ::2] = np.cos(pe[:, ::2])
    pe[:, 1::2] = np.sin(pe[:, 1::2])

    params = {
        "pos_enc": jnp.asarray(pe, dtype=jnp.float32),                 # (maxlen, D)
        "w_in": _uniform(ks[0], (2, d_model), 2),                      # lin_in.weight^T
        "b_in": _uniform(ks[1], (1, d_model), 2),
        "w1": jnp.stack([_uniform(ks[2 + 4 * l], (d_model, d_model), d_model)
                         for l in range(n_layers)]),
        "b1": jnp.stack([_uniform(ks[3 + 4 * l], (1, d_model), d_model)
                         for l in range(n_layers)]),
        "w2": jnp.stack([_uniform(ks[4 + 4 * l], (d_model, d_model), d_model)
                         for l in range(n_layers)]),
        "b2": jnp.stack([_uniform(ks[5 + 4 * l], (1, d_model), d_model)
                         for l in range(n_layers)]),
        "gamma": jnp.ones((n_layers, 1, d_model), jnp.float32),        # LayerNorm weight
        "beta": jnp.zeros((n_layers, 1, d_model), jnp.float32),        # LayerNorm bias
        "w_out": _uniform(ks[10], (2, d_model), d_model),              # lin_out.weight (out,in)
        "b_out": _uniform(ks[11], (1, 2), d_model),
    }

    x = jax.random.normal(ks[12], (batch, 2), jnp.float32)
    t = jax.random.randint(ks[13], (batch,), 0, maxlen, dtype=jnp.int32)

    fwd = jax.jit(basic_discrete_time_model)
    out = jax.block_until_ready(fwd(params, x, t))

    ref = reference_forward(params, x, t)
    assert out.shape == (batch, 2), out.shape
    max_err = float(jnp.max(jnp.abs(out - ref)))
    assert jnp.allclose(out, ref, atol=1e-2, rtol=1e-2), f"max abs err = {max_err}"

    print("KERNEL_OK")
</pallas_src>

<mosaic_0001>
module attributes {stable_mosaic.version = 11 : i64} {
  func.func @_model_kernel(%arg0: i32, %arg1: memref<8x2xf32, #tpu.memory_space<vmem>>, %arg2: memref<8x1xi32, #tpu.memory_space<vmem>>, %arg3: memref<512x128xf32, #tpu.memory_space<vmem>>, %arg4: memref<2x128xf32, #tpu.memory_space<vmem>>, %arg5: memref<1x128xf32, #tpu.memory_space<vmem>>, %arg6: memref<2x128x128xf32, #tpu.memory_space<vmem>>, %arg7: memref<2x1x128xf32, #tpu.memory_space<vmem>>, %arg8: memref<2x128x128xf32, #tpu.memory_space<vmem>>, %arg9: memref<2x1x128xf32, #tpu.memory_space<vmem>>, %arg10: memref<2x1x128xf32, #tpu.memory_space<vmem>>, %arg11: memref<2x1x128xf32, #tpu.memory_space<vmem>>, %arg12: memref<2x128xf32, #tpu.memory_space<vmem>>, %arg13: memref<1x2xf32, #tpu.memory_space<vmem>>, %arg14: memref<8x2xf32, #tpu.memory_space<vmem>>) attributes {dimension_semantics = [#tpu.dimension_semantics<parallel>], iteration_bounds = array<i64: 1>, scalar_prefetch = 0 : i64, scratch_operands = 0 : i64, tpu.core_type = #tpu.core_type<tc>, window_params = [{transform_indices = @transform_0, window_bounds = array<i64: 8, 2>}, {transform_indices = @transform_1, window_bounds = array<i64: 8, 1>}, {pipeline_mode = #tpu.pipeline_mode<synchronous>, transform_indices = @transform_2, window_bounds = array<i64: 512, 128>}, {pipeline_mode = #tpu.pipeline_mode<synchronous>, transform_indices = @transform_3, window_bounds = array<i64: 2, 128>}, {pipeline_mode = #tpu.pipeline_mode<synchronous>, transform_indices = @transform_4, window_bounds = array<i64: 1, 128>}, {pipeline_mode = #tpu.pipeline_mode<synchronous>, transform_indices = @transform_5, window_bounds = array<i64: 2, 128, 128>}, {pipeline_mode = #tpu.pipeline_mode<synchronous>, transform_indices = @transform_6, window_bounds = array<i64: 2, 1, 128>}, {pipeline_mode = #tpu.pipeline_mode<synchronous>, transform_indices = @transform_7, window_bounds = array<i64: 2, 128, 128>}, {pipeline_mode = #tpu.pipeline_mode<synchronous>, transform_indices = @transform_8, window_bounds = array<i64: 2, 1, 128>}, {pipeline_mode = #tpu.pipeline_mode<synchronous>, transform_indices = @transform_9, window_bounds = array<i64: 2, 1, 128>}, {pipeline_mode = #tpu.pipeline_mode<synchronous>, transform_indices = @transform_10, window_bounds = array<i64: 2, 1, 128>}, {pipeline_mode = #tpu.pipeline_mode<synchronous>, transform_indices = @transform_11, window_bounds = array<i64: 2, 128>}, {pipeline_mode = #tpu.pipeline_mode<synchronous>, transform_indices = @transform_12, window_bounds = array<i64: 1, 2>}, {transform_indices = @transform_13, window_bounds = array<i64: 8, 2>}]} {
    %c0 = arith.constant 0 : index
    %c0_0 = arith.constant 0 : index
    %0 = vector.load %arg1[%c0, %c0_0] : memref<8x2xf32, #tpu.memory_space<vmem>>, vector<8x2xf32>
    %c0_1 = arith.constant 0 : index
    %c0_2 = arith.constant 0 : index
    %1 = vector.load %arg2[%c0_1, %c0_2] : memref<8x1xi32, #tpu.memory_space<vmem>>, vector<8x1xi32>
    %2 = tpu.iota {dimensions = array<i32: 1>} : vector<8x512xi32>
    %3 = vector.broadcast %1 : vector<8x1xi32> to vector<8x512xi32>
    %4 = arith.cmpi eq, %2, %3 : vector<8x512xi32>
    %5 = arith.extui %4 : vector<8x512xi1> to vector<8x512xi32>
    %6 = arith.sitofp %5 : vector<8x512xi32> to vector<8x512xf32>
    %c0_3 = arith.constant 0 : index
    %c0_4 = arith.constant 0 : index
    %7 = vector.load %arg3[%c0_3, %c0_4] : memref<512x128xf32, #tpu.memory_space<vmem>>, vector<512x128xf32>
    %cst = arith.constant dense<0.000000e+00> : vector<8x128xf32>
    %8 = tpu.matmul %6, %7, %cst {dimension_numbers = #tpu.dot_dimension_numbers<[1], [0], [0], [1], [0, 0, 1, 1], [], []>} : vector<8x512xf32>, vector<512x128xf32>, vector<8x128xf32> -> vector<8x128xf32>
    %c0_5 = arith.constant 0 : index
    %c0_6 = arith.constant 0 : index
    %9 = vector.load %arg4[%c0_5, %c0_6] : memref<2x128xf32, #tpu.memory_space<vmem>>, vector<2x128xf32>
    %10 = vector.extract_strided_slice %0 {offsets = [0, 0], sizes = [8, 1], strides = [1, 1]} : vector<8x2xf32> to vector<8x1xf32>
    %11 = vector.extract_strided_slice %9 {offsets = [0, 0], sizes = [1, 128], strides = [1, 1]} : vector<2x128xf32> to vector<1x128xf32>
    %12 = vector.broadcast %10 : vector<8x1xf32> to vector<8x128xf32>
    %13 = vector.broadcast %11 : vector<1x128xf32> to vector<8x128xf32>
    %14 = arith.mulf %12, %13 : vector<8x128xf32>
    %15 = vector.extract_strided_slice %0 {offsets = [0, 1], sizes = [8, 1], strides = [1, 1]} : vector<8x2xf32> to vector<8x1xf32>
    %16 = vector.extract_strided_slice %9 {offsets = [1, 0], sizes = [1, 128], strides = [1, 1]} : vector<2x128xf32> to vector<1x128xf32>
    %17 = vector.broadcast %15 : vector<8x1xf32> to vector<8x128xf32>
    %18 = vector.broadcast %16 : vector<1x128xf32> to vector<8x128xf32>
    %19 = arith.mulf %17, %18 : vector<8x128xf32>
    %20 = arith.addf %14, %19 : vector<8x128xf32>
    %c0_7 = arith.constant 0 : index
    %c0_8 = arith.constant 0 : index
    %21 = vector.load %arg5[%c0_7, %c0_8] : memref<1x128xf32, #tpu.memory_space<vmem>>, vector<1x128xf32>
    %22 = vector.broadcast %21 : vector<1x128xf32> to vector<8x128xf32>
    %23 = arith.addf %20, %22 : vector<8x128xf32>
    %24 = arith.addf %23, %8 : vector<8x128xf32>
    %c0_9 = arith.constant 0 : index
    %c0_10 = arith.constant 0 : index
    %c0_11 = arith.constant 0 : index
    %25 = vector.load %arg6[%c0_9, %c0_10, %c0_11] : memref<2x128x128xf32, #tpu.memory_space<vmem>>, vector<1x128x128xf32>
    %26 = vector.shape_cast %25 : vector<1x128x128xf32> to vector<128x128xf32>
    %cst_12 = arith.constant dense<0.000000e+00> : vector<8x128xf32>
    %27 = tpu.matmul %24, %26, %cst_12 {dimension_numbers = #tpu.dot_dimension_numbers<[1], [0], [0], [1], [0, 0, 1, 1], [], []>} : vector<8x128xf32>, vector<128x128xf32>, vector<8x128xf32> -> vector<8x128xf32>
    %c0_13 = arith.constant 0 : index
    %c0_14 = arith.constant 0 : index
    %c0_15 = arith.constant 0 : index
    %28 = vector.load %arg7[%c0_13, %c0_14, %c0_15] : memref<2x1x128xf32, #tpu.memory_space<vmem>>, vector<1x1x128xf32>
    %29 = vector.shape_cast %28 : vector<1x1x128xf32> to vector<1x128xf32>
    %30 = vector.broadcast %29 : vector<1x128xf32> to vector<8x128xf32>
    %31 = arith.addf %27, %30 : vector<8x128xf32>
    %cst_16 = arith.constant 5.000000e-01 : f32
    %32 = vector.broadcast %cst_16 : f32 to vector<8x128xf32>
    %33 = arith.mulf %32, %31 : vector<8x128xf32>
    %cst_17 = arith.constant 0.707106769 : f32
    %34 = vector.broadcast %cst_17 : f32 to vector<8x128xf32>
    %35 = arith.mulf %31, %34 : vector<8x128xf32>
    %cst_18 = arith.constant 0.000000e+00 : f32
    %36 = vector.broadcast %cst_18 : f32 to vector<8x128xf32>
    %37 = arith.cmpf oge, %35, %36 : vector<8x128xf32>
    %cst_19 = arith.constant 1.000000e+00 : f32
    %cst_20 = arith.constant -1.000000e+00 : f32
    %38 = vector.broadcast %cst_19 : f32 to vector<8x128xf32>
    %39 = vector.broadcast %cst_20 : f32 to vector<8x128xf32>
    %40 = arith.select %37, %38, %39 : vector<8x128xi1>, vector<8x128xf32>
    %41 = math.absf %35 : vector<8x128xf32>
    %cst_21 = arith.constant 0.327591091 : f32
    %42 = vector.broadcast %cst_21 : f32 to vector<8x128xf32>
    %43 = arith.mulf %42, %41 : vector<8x128xf32>
    %cst_22 = arith.constant 1.000000e+00 : f32
    %44 = vector.broadcast %cst_22 : f32 to vector<8x128xf32>
    %45 = arith.addf %44, %43 : vector<8x128xf32>
    %cst_23 = arith.constant 1.000000e+00 : f32
    %46 = vector.broadcast %cst_23 : f32 to vector<8x128xf32>
    %47 = arith.divf %46, %45 : vector<8x128xf32>
    %cst_24 = arith.constant 1.06140542 : f32
    %48 = vector.broadcast %cst_24 : f32 to vector<8x128xf32>
    %49 = arith.mulf %48, %47 : vector<8x128xf32>
    %cst_25 = arith.constant -1.45315206 : f32
    %50 = vector.broadcast %cst_25 : f32 to vector<8x128xf32>
    %51 = arith.addf %49, %50 : vector<8x128xf32>
    %52 = arith.mulf %51, %47 : vector<8x128xf32>
    %cst_26 = arith.constant 1.42141378 : f32
    %53 = vector.broadcast %cst_26 : f32 to vector<8x128xf32>
    %54 = arith.addf %52, %53 : vector<8x128xf32>
    %55 = arith.mulf %54, %47 : vector<8x128xf32>
    %cst_27 = arith.constant -0.284496725 : f32
    %56 = vector.broadcast %cst_27 : f32 to vector<8x128xf32>
    %57 = arith.addf %55, %56 : vector<8x128xf32>
    %58 = arith.mulf %57, %47 : vector<8x128xf32>
    %cst_28 = arith.constant 0.254829586 : f32
    %59 = vector.broadcast %cst_28 : f32 to vector<8x128xf32>
    %60 = arith.addf %58, %59 : vector<8x128xf32>
    %61 = arith.mulf %60, %47 : vector<8x128xf32>
    %cst_29 = arith.constant 0.000000e+00 : f32
    %62 = vector.broadcast %cst_29 : f32 to vector<8x128xf32>
    %63 = arith.subf %62, %41 : vector<8x128xf32>
    %64 = arith.mulf %63, %41 : vector<8x128xf32>
    %65 = math.exp %64 : vector<8x128xf32>
    %66 = arith.mulf %61, %65 : vector<8x128xf32>
    %cst_30 = arith.constant 1.000000e+00 : f32
    %67 = vector.broadcast %cst_30 : f32 to vector<8x128xf32>
    %68 = arith.subf %67, %66 : vector<8x128xf32>
    %69 = arith.mulf %40, %68 : vector<8x128xf32>
    %cst_31 = arith.constant 1.000000e+00 : f32
    %70 = vector.broadcast %cst_31 : f32 to vector<8x128xf32>
    %71 = arith.addf %70, %69 : vector<8x128xf32>
    %72 = arith.mulf %33, %71 : vector<8x128xf32>
    %c0_32 = arith.constant 0 : index
    %c0_33 = arith.constant 0 : index
    %c0_34 = arith.constant 0 : index
    %73 = vector.load %arg8[%c0_32, %c0_33, %c0_34] : memref<2x128x128xf32, #tpu.memory_space<vmem>>, vector<1x128x128xf32>
    %74 = vector.shape_cast %73 : vector<1x128x128xf32> to vector<128x128xf32>
    %cst_35 = arith.constant dense<0.000000e+00> : vector<8x128xf32>
    %75 = tpu.matmul %72, %74, %cst_35 {dimension_numbers = #tpu.dot_dimension_numbers<[1], [0], [0], [1], [0, 0, 1, 1], [], []>} : vector<8x128xf32>, vector<128x128xf32>, vector<8x128xf32> -> vector<8x128xf32>
    %76 = arith.addf %23, %75 : vector<8x128xf32>
    %c0_36 = arith.constant 0 : index
    %c0_37 = arith.constant 0 : index
    %c0_38 = arith.constant 0 : index
    %77 = vector.load %arg9[%c0_36, %c0_37, %c0_38] : memref<2x1x128xf32, #tpu.memory_space<vmem>>, vector<1x1x128xf32>
    %78 = vector.shape_cast %77 : vector<1x1x128xf32> to vector<1x128xf32>
    %79 = vector.broadcast %78 : vector<1x128xf32> to vector<8x128xf32>
    %80 = arith.addf %76, %79 : vector<8x128xf32>
    %cst_39 = arith.constant dense<0.000000e+00> : vector<8xf32>
    %81 = vector.multi_reduction <add>, %80, %cst_39 [1] : vector<8x128xf32> to vector<8xf32>
    %82 = vector.shape_cast %81 : vector<8xf32> to vector<8x1xf32>
    %cst_40 = arith.constant 1.280000e+02 : f32
    %83 = vector.broadcast %cst_40 : f32 to vector<8x1xf32>
    %84 = arith.divf %82, %83 : vector<8x1xf32>
    %85 = vector.broadcast %84 : vector<8x1xf32> to vector<8x128xf32>
    %86 = arith.subf %80, %85 : vector<8x128xf32>
    %87 = arith.mulf %86, %86 : vector<8x128xf32>
    %cst_41 = arith.constant dense<0.000000e+00> : vector<8xf32>
    %88 = vector.multi_reduction <add>, %87, %cst_41 [1] : vector<8x128xf32> to vector<8xf32>
    %89 = vector.shape_cast %88 : vector<8xf32> to vector<8x1xf32>
    %cst_42 = arith.constant 1.280000e+02 : f32
    %90 = vector.broadcast %cst_42 : f32 to vector<8x1xf32>
    %91 = arith.divf %89, %90 : vector<8x1xf32>
    %cst_43 = arith.constant 9.99999974E-6 : f32
    %92 = vector.broadcast %cst_43 : f32 to vector<8x1xf32>
    %93 = arith.addf %91, %92 : vector<8x1xf32>
    %94 = math.rsqrt %93 : vector<8x1xf32>
    %95 = vector.broadcast %94 : vector<8x1xf32> to vector<8x128xf32>
    %96 = arith.mulf %86, %95 : vector<8x128xf32>
    %c0_44 = arith.constant 0 : index
    %c0_45 = arith.constant 0 : index
    %c0_46 = arith.constant 0 : index
    %97 = vector.load %arg10[%c0_44, %c0_45, %c0_46] : memref<2x1x128xf32, #tpu.memory_space<vmem>>, vector<1x1x128xf32>
    %98 = vector.shape_cast %97 : vector<1x1x128xf32> to vector<1x128xf32>
    %99 = vector.broadcast %98 : vector<1x128xf32> to vector<8x128xf32>
    %100 = arith.mulf %96, %99 : vector<8x128xf32>
    %c0_47 = arith.constant 0 : index
    %c0_48 = arith.constant 0 : index
    %c0_49 = arith.constant 0 : index
    %101 = vector.load %arg11[%c0_47, %c0_48, %c0_49] : memref<2x1x128xf32, #tpu.memory_space<vmem>>, vector<1x1x128xf32>
    %102 = vector.shape_cast %101 : vector<1x1x128xf32> to vector<1x128xf32>
    %103 = vector.broadcast %102 : vector<1x128xf32> to vector<8x128xf32>
    %104 = arith.addf %100, %103 : vector<8x128xf32>
    %105 = arith.addf %104, %8 : vector<8x128xf32>
    %c1 = arith.constant 1 : index
    %c0_50 = arith.constant 0 : index
    %c0_51 = arith.constant 0 : index
    %106 = vector.load %arg6[%c1, %c0_50, %c0_51] : memref<2x128x128xf32, #tpu.memory_space<vmem>>, vector<1x128x128xf32>
    %107 = vector.shape_cast %106 : vector<1x128x128xf32> to vector<128x128xf32>
    %cst_52 = arith.constant dense<0.000000e+00> : vector<8x128xf32>
    %108 = tpu.matmul %105, %107, %cst_52 {dimension_numbers = #tpu.dot_dimension_numbers<[1], [0], [0], [1], [0, 0, 1, 1], [], []>} : vector<8x128xf32>, vector<128x128xf32>, vector<8x128xf32> -> vector<8x128xf32>
    %c1_53 = arith.constant 1 : index
    %c0_54 = arith.constant 0 : index
    %c0_55 = arith.constant 0 : index
    %109 = vector.load %arg7[%c1_53, %c0_54, %c0_55] : memref<2x1x128xf32, #tpu.memory_space<vmem>>, vector<1x1x128xf32>
    %110 = vector.shape_cast %109 : vector<1x1x128xf32> to vector<1x128xf32>
    %111 = vector.broadcast %110 : vector<1x128xf32> to vector<8x128xf32>
    %112 = arith.addf %108, %111 : vector<8x128xf32>
    %cst_56 = arith.constant 5.000000e-01 : f32
    %113 = vector.broadcast %cst_56 : f32 to vector<8x128xf32>
    %114 = arith.mulf %113, %112 : vector<8x128xf32>
    %cst_57 = arith.constant 0.707106769 : f32
    %115 = vector.broadcast %cst_57 : f32 to vector<8x128xf32>
    %116 = arith.mulf %112, %115 : vector<8x128xf32>
    %cst_58 = arith.constant 0.000000e+00 : f32
    %117 = vector.broadcast %cst_58 : f32 to vector<8x128xf32>
    %118 = arith.cmpf oge, %116, %117 : vector<8x128xf32>
    %cst_59 = arith.constant 1.000000e+00 : f32
    %cst_60 = arith.constant -1.000000e+00 : f32
    %119 = vector.broadcast %cst_59 : f32 to vector<8x128xf32>
    %120 = vector.broadcast %cst_60 : f32 to vector<8x128xf32>
    %121 = arith.select %118, %119, %120 : vector<8x128xi1>, vector<8x128xf32>
    %122 = math.absf %116 : vector<8x128xf32>
    %cst_61 = arith.constant 0.327591091 : f32
    %123 = vector.broadcast %cst_61 : f32 to vector<8x128xf32>
    %124 = arith.mulf %123, %122 : vector<8x128xf32>
    %cst_62 = arith.constant 1.000000e+00 : f32
    %125 = vector.broadcast %cst_62 : f32 to vector<8x128xf32>
    %126 = arith.addf %125, %124 : vector<8x128xf32>
    %cst_63 = arith.constant 1.000000e+00 : f32
    %127 = vector.broadcast %cst_63 : f32 to vector<8x128xf32>
    %128 = arith.divf %127, %126 : vector<8x128xf32>
    %cst_64 = arith.constant 1.06140542 : f32
    %129 = vector.broadcast %cst_64 : f32 to vector<8x128xf32>
    %130 = arith.mulf %129, %128 : vector<8x128xf32>
    %cst_65 = arith.constant -1.45315206 : f32
    %131 = vector.broadcast %cst_65 : f32 to vector<8x128xf32>
    %132 = arith.addf %130, %131 : vector<8x128xf32>
    %133 = arith.mulf %132, %128 : vector<8x128xf32>
    %cst_66 = arith.constant 1.42141378 : f32
    %134 = vector.broadcast %cst_66 : f32 to vector<8x128xf32>
    %135 = arith.addf %133, %134 : vector<8x128xf32>
    %136 = arith.mulf %135, %128 : vector<8x128xf32>
    %cst_67 = arith.constant -0.284496725 : f32
    %137 = vector.broadcast %cst_67 : f32 to vector<8x128xf32>
    %138 = arith.addf %136, %137 : vector<8x128xf32>
    %139 = arith.mulf %138, %128 : vector<8x128xf32>
    %cst_68 = arith.constant 0.254829586 : f32
    %140 = vector.broadcast %cst_68 : f32 to vector<8x128xf32>
    %141 = arith.addf %139, %140 : vector<8x128xf32>
    %142 = arith.mulf %141, %128 : vector<8x128xf32>
    %cst_69 = arith.constant 0.000000e+00 : f32
    %143 = vector.broadcast %cst_69 : f32 to vector<8x128xf32>
    %144 = arith.subf %143, %122 : vector<8x128xf32>
    %145 = arith.mulf %144, %122 : vector<8x128xf32>
    %146 = math.exp %145 : vector<8x128xf32>
    %147 = arith.mulf %142, %146 : vector<8x128xf32>
    %cst_70 = arith.constant 1.000000e+00 : f32
    %148 = vector.broadcast %cst_70 : f32 to vector<8x128xf32>
    %149 = arith.subf %148, %147 : vector<8x128xf32>
    %150 = arith.mulf %121, %149 : vector<8x128xf32>
    %cst_71 = arith.constant 1.000000e+00 : f32
    %151 = vector.broadcast %cst_71 : f32 to vector<8x128xf32>
    %152 = arith.addf %151, %150 : vector<8x128xf32>
    %153 = arith.mulf %114, %152 : vector<8x128xf32>
    %c1_72 = arith.constant 1 : index
    %c0_73 = arith.constant 0 : index
    %c0_74 = arith.constant 0 : index
    %154 = vector.load %arg8[%c1_72, %c0_73, %c0_74] : memref<2x128x128xf32, #tpu.memory_space<vmem>>, vector<1x128x128xf32>
    %155 = vector.shape_cast %154 : vector<1x128x128xf32> to vector<128x128xf32>
    %cst_75 = arith.constant dense<0.000000e+00> : vector<8x128xf32>
    %156 = tpu.matmul %153, %155, %cst_75 {dimension_numbers = #tpu.dot_dimension_numbers<[1], [0], [0], [1], [0, 0, 1, 1], [], []>} : vector<8x128xf32>, vector<128x128xf32>, vector<8x128xf32> -> vector<8x128xf32>
    %157 = arith.addf %104, %156 : vector<8x128xf32>
    %c1_76 = arith.constant 1 : index
    %c0_77 = arith.constant 0 : index
    %c0_78 = arith.constant 0 : index
    %158 = vector.load %arg9[%c1_76, %c0_77, %c0_78] : memref<2x1x128xf32, #tpu.memory_space<vmem>>, vector<1x1x128xf32>
    %159 = vector.shape_cast %158 : vector<1x1x128xf32> to vector<1x128xf32>
    %160 = vector.broadcast %159 : vector<1x128xf32> to vector<8x128xf32>
    %161 = arith.addf %157, %160 : vector<8x128xf32>
    %cst_79 = arith.constant dense<0.000000e+00> : vector<8xf32>
    %162 = vector.multi_reduction <add>, %161, %cst_79 [1] : vector<8x128xf32> to vector<8xf32>
    %163 = vector.shape_cast %162 : vector<8xf32> to vector<8x1xf32>
    %cst_80 = arith.constant 1.280000e+02 : f32
    %164 = vector.broadcast %cst_80 : f32 to vector<8x1xf32>
    %165 = arith.divf %163, %164 : vector<8x1xf32>
    %166 = vector.broadcast %165 : vector<8x1xf32> to vector<8x128xf32>
    %167 = arith.subf %161, %166 : vector<8x128xf32>
    %168 = arith.mulf %167, %167 : vector<8x128xf32>
    %cst_81 = arith.constant dense<0.000000e+00> : vector<8xf32>
    %169 = vector.multi_reduction <add>, %168, %cst_81 [1] : vector<8x128xf32> to vector<8xf32>
    %170 = vector.shape_cast %169 : vector<8xf32> to vector<8x1xf32>
    %cst_82 = arith.constant 1.280000e+02 : f32
    %171 = vector.broadcast %cst_82 : f32 to vector<8x1xf32>
    %172 = arith.divf %170, %171 : vector<8x1xf32>
    %cst_83 = arith.constant 9.99999974E-6 : f32
    %173 = vector.broadcast %cst_83 : f32 to vector<8x1xf32>
    %174 = arith.addf %172, %173 : vector<8x1xf32>
    %175 = math.rsqrt %174 : vector<8x1xf32>
    %176 = vector.broadcast %175 : vector<8x1xf32> to vector<8x128xf32>
    %177 = arith.mulf %167, %176 : vector<8x128xf32>
    %c1_84 = arith.constant 1 : index
    %c0_85 = arith.constant 0 : index
    %c0_86 = arith.constant 0 : index
    %178 = vector.load %arg10[%c1_84, %c0_85, %c0_86] : memref<2x1x128xf32, #tpu.memory_space<vmem>>, vector<1x1x128xf32>
    %179 = vector.shape_cast %178 : vector<1x1x128xf32> to vector<1x128xf32>
    %180 = vector.broadcast %179 : vector<1x128xf32> to vector<8x128xf32>
    %181 = arith.mulf %177, %180 : vector<8x128xf32>
    %c1_87 = arith.constant 1 : index
    %c0_88 = arith.constant 0 : index
    %c0_89 = arith.constant 0 : index
    %182 = vector.load %arg11[%c1_87, %c0_88, %c0_89] : memref<2x1x128xf32, #tpu.memory_space<vmem>>, vector<1x1x128xf32>
    %183 = vector.shape_cast %182 : vector<1x1x128xf32> to vector<1x128xf32>
    %184 = vector.broadcast %183 : vector<1x128xf32> to vector<8x128xf32>
    %185 = arith.addf %181, %184 : vector<8x128xf32>
    %c0_90 = arith.constant 0 : index
    %c0_91 = arith.constant 0 : index
    %186 = vector.load %arg12[%c0_90, %c0_91] : memref<2x128xf32, #tpu.memory_space<vmem>>, vector<2x128xf32>
    %c0_92 = arith.constant 0 : index
    %c0_93 = arith.constant 0 : index
    %187 = vector.load %arg13[%c0_92, %c0_93] : memref<1x2xf32, #tpu.memory_space<vmem>>, vector<1x2xf32>
    %188 = vector.extract_strided_slice %186 {offsets = [0, 0], sizes = [1, 128], strides = [1, 1]} : vector<2x128xf32> to vector<1x128xf32>
    %189 = vector.broadcast %188 : vector<1x128xf32> to vector<8x128xf32>
    %190 = arith.mulf %185, %189 : vector<8x128xf32>
    %cst_94 = arith.constant dense<0.000000e+00> : vector<8xf32>
    %191 = vector.multi_reduction <add>, %190, %cst_94 [1] : vector<8x128xf32> to vector<8xf32>
    %192 = vector.shape_cast %191 : vector<8xf32> to vector<8x1xf32>
    %193 = vector.extract_strided_slice %187 {offsets = [0, 0], sizes = [1, 1], strides = [1, 1]} : vector<1x2xf32> to vector<1x1xf32>
    %194 = vector.broadcast %193 : vector<1x1xf32> to vector<8x1xf32>
    %195 = arith.addf %192, %194 : vector<8x1xf32>
    %196 = vector.extract_strided_slice %186 {offsets = [1, 0], sizes = [1, 128], strides = [1, 1]} : vector<2x128xf32> to vector<1x128xf32>
    %197 = vector.broadcast %196 : vector<1x128xf32> to vector<8x128xf32>
    %198 = arith.mulf %185, %197 : vector<8x128xf32>
    %cst_95 = arith.constant dense<0.000000e+00> : vector<8xf32>
    %199 = vector.multi_reduction <add>, %198, %cst_95 [1] : vector<8x128xf32> to vector<8xf32>
    %200 = vector.shape_cast %199 : vector<8xf32> to vector<8x1xf32>
    %201 = vector.extract_strided_slice %187 {offsets = [0, 1], sizes = [1, 1], strides = [1, 1]} : vector<1x2xf32> to vector<1x1xf32>
    %202 = vector.broadcast %201 : vector<1x1xf32> to vector<8x1xf32>
    %203 = arith.addf %200, %202 : vector<8x1xf32>
    %c0_96 = arith.constant 0 : index
    %c0_97 = arith.constant 0 : index
    %204 = vector.load %arg14[%c0_96, %c0_97] : memref<8x2xf32, #tpu.memory_space<vmem>>, vector<8x1xf32>
    tpu.vector_store %arg14[%c0_96, %c0_97], %195 {strides = array<i32>} : memref<8x2xf32, #tpu.memory_space<vmem>>, vector<8x1xf32>,
    %c0_98 = arith.constant 0 : index
    %c1_99 = arith.constant 1 : index
    %205 = vector.load %arg14[%c0_98, %c1_99] : memref<8x2xf32, #tpu.memory_space<vmem>>, vector<8x1xf32>
    tpu.vector_store %arg14[%c0_98, %c1_99], %203 {strides = array<i32>} : memref<8x2xf32, #tpu.memory_space<vmem>>, vector<8x1xf32>,
    return
  }
  func.func @transform_0(%arg0: i32) -> (i32, i32) {
    %c0_i32 = arith.constant 0 : i32
    %c0_i32_0 = arith.constant 0 : i32
    return %arg0, %c0_i32 : i32, i32
  }
  func.func @transform_1(%arg0: i32) -> (i32, i32) {
    %c0_i32 = arith.constant 0 : i32
    %c0_i32_0 = arith.constant 0 : i32
    return %arg0, %c0_i32 : i32, i32
  }
  func.func @transform_2(%arg0: i32) -> (i32, i32) {
    %c0_i32 = arith.constant 0 : i32
    %c0_i32_0 = arith.constant 0 : i32
    %c0_i32_1 = arith.constant 0 : i32
    return %c0_i32, %c0_i32_0 : i32, i32
  }
  func.func @transform_3(%arg0: i32) -> (i32, i32) {
    %c0_i32 = arith.constant 0 : i32
    %c0_i32_0 = arith.constant 0 : i32
    %c0_i32_1 = arith.constant 0 : i32
    return %c0_i32, %c0_i32_0 : i32, i32
  }
  func.func @transform_4(%arg0: i32) -> (i32, i32) {
    %c0_i32 = arith.constant 0 : i32
    %c0_i32_0 = arith.constant 0 : i32
    %c0_i32_1 = arith.constant 0 : i32
    return %c0_i32, %c0_i32_0 : i32, i32
  }
  func.func @transform_5(%arg0: i32) -> (i32, i32, i32) {
    %c0_i32 = arith.constant 0 : i32
    %c0_i32_0 = arith.constant 0 : i32
    %c0_i32_1 = arith.constant 0 : i32
    %c0_i32_2 = arith.constant 0 : i32
    return %c0_i32, %c0_i32_0, %c0_i32_1 : i32, i32, i32
  }
  func.func @transform_6(%arg0: i32) -> (i32, i32, i32) {
    %c0_i32 = arith.constant 0 : i32
    %c0_i32_0 = arith.constant 0 : i32
    %c0_i32_1 = arith.constant 0 : i32
    %c0_i32_2 = arith.constant 0 : i32
    return %c0_i32, %c0_i32_0, %c0_i32_1 : i32, i32, i32
  }
  func.func @transform_7(%arg0: i32) -> (i32, i32, i32) {
    %c0_i32 = arith.constant 0 : i32
    %c0_i32_0 = arith.constant 0 : i32
    %c0_i32_1 = arith.constant 0 : i32
    %c0_i32_2 = arith.constant 0 : i32
    return %c0_i32, %c0_i32_0, %c0_i32_1 : i32, i32, i32
  }
  func.func @transform_8(%arg0: i32) -> (i32, i32, i32) {
    %c0_i32 = arith.constant 0 : i32
    %c0_i32_0 = arith.constant 0 : i32
    %c0_i32_1 = arith.constant 0 : i32
    %c0_i32_2 = arith.constant 0 : i32
    return %c0_i32, %c0_i32_0, %c0_i32_1 : i32, i32, i32
  }
  func.func @transform_9(%arg0: i32) -> (i32, i32, i32) {
    %c0_i32 = arith.constant 0 : i32
    %c0_i32_0 = arith.constant 0 : i32
    %c0_i32_1 = arith.constant 0 : i32
    %c0_i32_2 = arith.constant 0 : i32
    return %c0_i32, %c0_i32_0, %c0_i32_1 : i32, i32, i32
  }
  func.func @transform_10(%arg0: i32) -> (i32, i32, i32) {
    %c0_i32 = arith.constant 0 : i32
    %c0_i32_0 = arith.constant 0 : i32
    %c0_i32_1 = arith.constant 0 : i32
    %c0_i32_2 = arith.constant 0 : i32
    return %c0_i32, %c0_i32_0, %c0_i32_1 : i32, i32, i32
  }
  func.func @transform_11(%arg0: i32) -> (i32, i32) {
    %c0_i32 = arith.constant 0 : i32
    %c0_i32_0 = arith.constant 0 : i32
    %c0_i32_1 = arith.constant 0 : i32
    return %c0_i32, %c0_i32_0 : i32, i32
  }
  func.func @transform_12(%arg0: i32) -> (i32, i32) {
    %c0_i32 = arith.constant 0 : i32
    %c0_i32_0 = arith.constant 0 : i32
    %c0_i32_1 = arith.constant 0 : i32
    return %c0_i32, %c0_i32_0 : i32, i32
  }
  func.func @transform_13(%arg0: i32) -> (i32, i32) {
    %c0_i32 = arith.constant 0 : i32
    %c0_i32_0 = arith.constant 0 : i32
    return %arg0, %c0_i32 : i32, i32
  }
}

</mosaic_0001>

<llo_original>
// kernel: basic_discrete_time_model.1
$region0: #{basic_discrete_time_model.1}
  #allocation0 [shape = 'u32[]', space=smem, size = 0x4, offset = 0x4, fixed_abs, tag = 'smem constant byte address 0x4 - core index']
  #allocation1 [shape = 'u32[144,128]{1,0:T(1,128)}', space=vmem, size = 0x12000, scoped, tag = 'internal scratch']
  %s0 = inlined_call_operand.vmem [shape: f32[8,2], index: 0, kind: input, shape index: {}]
  %s1 = inlined_call_operand.vmem [shape: s32[8,1], index: 1, kind: input, shape index: {}]
  %s2 = inlined_call_operand.hbm [shape: f32[512,128], index: 2, kind: input, shape index: {}]
  %s3 = inlined_call_operand.vmem [shape: f32[2,128], index: 3, kind: input, shape index: {}]
  %s4 = inlined_call_operand.vmem [shape: f32[1,128], index: 4, kind: input, shape index: {}]
  %s5 = inlined_call_operand.hbm [shape: f32[2,128,128], index: 5, kind: input, shape index: {}]
  %s6 = inlined_call_operand.vmem [shape: f32[2,1,128], index: 6, kind: input, shape index: {}]
  %s7 = inlined_call_operand.hbm [shape: f32[2,128,128], index: 7, kind: input, shape index: {}]
  %s8 = inlined_call_operand.vmem [shape: f32[2,1,128], index: 8, kind: input, shape index: {}]
  %s9 = inlined_call_operand.vmem [shape: f32[2,1,128], index: 9, kind: input, shape index: {}]
  %s10 = inlined_call_operand.vmem [shape: f32[2,1,128], index: 10, kind: input, shape index: {}]
  %s11 = inlined_call_operand.vmem [shape: f32[2,128], index: 11, kind: input, shape index: {}]
  %s12 = inlined_call_operand.vmem [shape: f32[1,2], index: 12, kind: input, shape index: {}]
  %s13 = inlined_call_operand.vmem [shape: f32[8,2], index: 13, kind: output, shape index: {}]
  %s14 = sld [smem:[#allocation0]]
  $region74: #{basic_discrete_time_model.1} parent=0
    _
  %s16 = ssub.s32 1, %s14
  %s17 = scalar_select 0, %s16, %s14
  $region1: #{basic_discrete_time_model.1} parent=0
    #allocation2 [shape = 'u8[262144]{0}', space=vmem, size = 0x40000, scoped, tag = 'input window, operand 2, single buffered']
    #allocation3 [shape = 's32[1]{0}', space=sflag, size = 0x4, scoped, tag = 'scoped memory for basic_discrete_time_model.1']
    #allocation4 [shape = 'u8[131072]{0}', space=vmem, size = 0x20000, scoped, tag = 'input window, operand 5, single buffered']
    #allocation5 [shape = 's32[1]{0}', space=sflag, size = 0x4, scoped, tag = 'scoped memory for basic_discrete_time_model.1']
    #allocation6 [shape = 'u8[131072]{0}', space=vmem, size = 0x20000, scoped, tag = 'input window, operand 7, single buffered']
    %18 = vsyncpa [#allocation3], 0
    %19 = vsyncpa [#allocation5], 0
    // Predicated region
    $region2: #{basic_discrete_time_model.1} parent=1 // pred_check
      _
    $region3: #{basic_discrete_time_model.1} parent=1 // pred_check_branch
      %21 = sbr.rel (0) target = $region5
    $region4: #{basic_discrete_time_model.1} parent=1 // pred_region
      _
    $region5: #{basic_discrete_time_model.1} parent=1 // pred_fallthru
      _
    // Predicated region
    $region6: #{basic_discrete_time_model.1} parent=1 // pred_check
      _
    $region7: #{basic_discrete_time_model.1} parent=1 // pred_check_branch
      %23 = sbr.rel (0) target = $region9
    $region8: #{basic_discrete_time_model.1} parent=1 // pred_region
      _
    $region9: #{basic_discrete_time_model.1} parent=1 // pred_fallthru
      _
    // Predicated region
    $region10: #{basic_discrete_time_model.1} parent=1 // pred_check
      _
    $region11: #{basic_discrete_time_model.1} parent=1 // pred_check_branch
      %25 = sbr.rel (0) target = $region13
    $region12: #{basic_discrete_time_model.1} parent=1 // pred_region
      %s27 = ssub.s32 8192, 8192
      %28 = vsyncadd [#allocation3], %s27
      %s29 = sshll.u32 [#allocation2], 4
      %s30 = int_to_ptr.vmem [resolvable:$true] %s29
      %35 = dma.hbm_to_vmem [thread:$0]  %s2, 8192, %s30, [#allocation3], 128, 128, 8
    $region13: #{basic_discrete_time_model.1} parent=1 // pred_fallthru
      _
    // Predicated region
    $region14: #{basic_discrete_time_model.1} parent=1 // pred_check
      _
    $region15: #{basic_discrete_time_model.1} parent=1 // pred_check_branch
      %37 = sbr.rel (0) target = $region17
    $region16: #{basic_discrete_time_model.1} parent=1 // pred_region
      _
    $region17: #{basic_discrete_time_model.1} parent=1 // pred_fallthru
      _
    // Predicated region
    $region18: #{basic_discrete_time_model.1} parent=1 // pred_check
      _
    $region19: #{basic_discrete_time_model.1} parent=1 // pred_check_branch
      %39 = sbr.rel (0) target = $region21
    $region20: #{basic_discrete_time_model.1} parent=1 // pred_region
      _
    $region21: #{basic_discrete_time_model.1} parent=1 // pred_fallthru
      _
    // Predicated region
    $region22: #{basic_discrete_time_model.1} parent=1 // pred_check
      _
    $region23: #{basic_discrete_time_model.1} parent=1 // pred_check_branch
      %41 = sbr.rel (0) target = $region25
    $region24: #{basic_discrete_time_model.1} parent=1 // pred_region
      %s43 = ssub.s32 4096, 4096
      %44 = vsyncadd [#allocation5], %s43
      %s45 = sshll.u32 [#allocation4], 4
      %s46 = int_to_ptr.vmem [resolvable:$true] %s45
      %51 = dma.hbm_to_vmem [thread:$0]  %s5, 4096, %s46, [#allocation5], 128, 128, 8
    $region25: #{basic_discrete_time_model.1} parent=1 // pred_fallthru
      _
    // Predicated region
    $region26: #{basic_discrete_time_model.1} parent=1 // pred_check
      _
    $region27: #{basic_discrete_time_model.1} parent=1 // pred_check_branch
      %53 = sbr.rel (0) target = $region29
    $region28: #{basic_discrete_time_model.1} parent=1 // pred_region
      _
    $region29: #{basic_discrete_time_model.1} parent=1 // pred_fallthru
      _
    // Predicated region
    $region30: #{basic_discrete_time_model.1} parent=1 // pred_check
      _
    $region31: #{basic_discrete_time_model.1} parent=1 // pred_check_branch
      %55 = sbr.rel (0) target = $region33
    $region32: #{basic_discrete_time_model.1} parent=1 // pred_region
      %s57 = ssub.s32 4096, 4096
      %58 = vsyncadd [#allocation5], %s57
      %s59 = sshll.u32 [#allocation6], 4
      %s60 = int_to_ptr.vmem [resolvable:$true] %s59
      %65 = dma.hbm_to_vmem [thread:$0]  %s7, 4096, %s60, [#allocation5], 128, 128, 8
    $region33: #{basic_discrete_time_model.1} parent=1 // pred_fallthru
      _
    // Predicated region
    $region34: #{basic_discrete_time_model.1} parent=1 // pred_check
      _
    $region35: #{basic_discrete_time_model.1} parent=1 // pred_check_branch
      %67 = sbr.rel (0) target = $region37
    $region36: #{basic_discrete_time_model.1} parent=1 // pred_region
      _
    $region37: #{basic_discrete_time_model.1} parent=1 // pred_fallthru
      _
    // Predicated region
    $region38: #{basic_discrete_time_model.1} parent=1 // pred_check
      _
    $region39: #{basic_discrete_time_model.1} parent=1 // pred_check_branch
      %69 = sbr.rel (0) target = $region41
    $region40: #{basic_discrete_time_model.1} parent=1 // pred_region
      _
    $region41: #{basic_discrete_time_model.1} parent=1 // pred_fallthru
      _
    // Predicated region
    $region42: #{basic_discrete_time_model.1} parent=1 // pred_check
      _
    $region43: #{basic_discrete_time_model.1} parent=1 // pred_check_branch
      %71 = sbr.rel (0) target = $region45
    $region44: #{basic_discrete_time_model.1} parent=1 // pred_region
      _
    $region45: #{basic_discrete_time_model.1} parent=1 // pred_fallthru
      _
    // Predicated region
    $region46: #{basic_discrete_time_model.1} parent=1 // pred_check
      _
    $region47: #{basic_discrete_time_model.1} parent=1 // pred_check_branch
      %73 = sbr.rel (0) target = $region49
    $region48: #{basic_discrete_time_model.1} parent=1 // pred_region
      _
    $region49: #{basic_discrete_time_model.1} parent=1 // pred_fallthru
      _
    // Predicated region
    $region50: #{basic_discrete_time_model.1} parent=1 // pred_check
      _
    $region51: #{basic_discrete_time_model.1} parent=1 // pred_check_branch
      %75 = sbr.rel (0) target = $region53
    $region52: #{basic_discrete_time_model.1} parent=1 // pred_region
      _
    $region53: #{basic_discrete_time_model.1} parent=1 // pred_fallthru
      _
    // Predicated region
    $region54: #{basic_discrete_time_model.1} parent=1 // pred_check
      _
    $region55: #{basic_discrete_time_model.1} parent=1 // pred_check_branch
      %77 = sbr.rel (0) target = $region57
    $region56: #{basic_discrete_time_model.1} parent=1 // pred_region
      %78 = dma.done [#allocation3], 8192
    $region57: #{basic_discrete_time_model.1} parent=1 // pred_fallthru
      _
    // Predicated region
    $region58: #{basic_discrete_time_model.1} parent=1 // pred_check
      _
    $region59: #{basic_discrete_time_model.1} parent=1 // pred_check_branch
      %80 = sbr.rel (0) target = $region61
    $region60: #{basic_discrete_time_model.1} parent=1 // pred_region
      %81 = dma.done [#allocation5], 4096
    $region61: #{basic_discrete_time_model.1} parent=1 // pred_fallthru
      _
    // Predicated region
    $region62: #{basic_discrete_time_model.1} parent=1 // pred_check
      _
    $region63: #{basic_discrete_time_model.1} parent=1 // pred_check_branch
      %83 = sbr.rel (0) target = $region65
    $region64: #{basic_discrete_time_model.1} parent=1 // pred_region
      %84 = dma.done [#allocation5], 4096
    $region65: #{basic_discrete_time_model.1} parent=1 // pred_fallthru
      _
    %v85 = vld [vmem:[%s0] sm:$0xff]
    %v86 = vld [vmem:[%s1] sm:$0xff]
    %v87 = vlaneseq
    %v88 = vand.u32 %v87, 127
    %v89 = vadd.s32 %v88, 128
    %v90 = vadd.s32 %v88, 256
    %v91 = vadd.s32 %v88, 384
    %92 = vset.pattern.permute.xlu0 0
    %93 = vperm.xlu0 %92, %v86
    %v94 = vpop.permute.xlu0 %93
    %vm95 = vcmp.eq.s32.totalorder %v88, %v94
    %vm96 = vcmp.eq.s32.totalorder %v89, %v94
    %vm97 = vcmp.eq.s32.totalorder %v90, %v94
    %vm98 = vcmp.eq.s32.totalorder %v91, %v94
    %v99 = vsel %vm95, 1, 0
    %v100 = vsel %vm96, 1, 0
    %v101 = vsel %vm97, 1, 0
    %v102 = vsel %vm98, 1, 0
    %v103 = vcvt.s32.f32 %v99
    %v104 = vcvt.s32.f32 %v100
    %v105 = vcvt.s32.f32 %v101
    %v106 = vcvt.s32.f32 %v102
    %v107 = vld [vmem:[#allocation2] sm:$0xff]
    %v108 = vld [vmem:[#allocation2 + $0x8] sm:$0xff]
    %v109 = vld [vmem:[#allocation2 + $0x10] sm:$0xff]
    %v110 = vld [vmem:[#allocation2 + $0x18] sm:$0xff]
    %v111 = vld [vmem:[#allocation2 + $0x20] sm:$0xff]
    %v112 = vld [vmem:[#allocation2 + $0x28] sm:$0xff]
    %v113 = vld [vmem:[#allocation2 + $0x30] sm:$0xff]
    %v114 = vld [vmem:[#allocation2 + $0x38] sm:$0xff]
    %v115 = vld [vmem:[#allocation2 + $0x40] sm:$0xff]
    %v116 = vld [vmem:[#allocation2 + $0x48] sm:$0xff]
    %v117 = vld [vmem:[#allocation2 + $0x50] sm:$0xff]
    %v118 = vld [vmem:[#allocation2 + $0x58] sm:$0xff]
    %v119 = vld [vmem:[#allocation2 + $0x60] sm:$0xff]
    %v120 = vld [vmem:[#allocation2 + $0x68] sm:$0xff]
    %v121 = vld [vmem:[#allocation2 + $0x70] sm:$0xff]
    %v122 = vld [vmem:[#allocation2 + $0x78] sm:$0xff]
    %v123 = vld [vmem:[#allocation2 + $0x80] sm:$0xff]
    %v124 = vld [vmem:[#allocation2 + $0x88] sm:$0xff]
    %v125 = vld [vmem:[#allocation2 + $0x90] sm:$0xff]
    %v126 = vld [vmem:[#allocation2 + $0x98] sm:$0xff]
    %v127 = vld [vmem:[#allocation2 + $0xa0] sm:$0xff]
    %v128 = vld [vmem:[#allocation2 + $0xa8] sm:$0xff]
    %v129 = vld [vmem:[#allocation2 + $0xb0] sm:$0xff]
    %v130 = vld [vmem:[#allocation2 + $0xb8] sm:$0xff]
    %v131 = vld [vmem:[#allocation2 + $0xc0] sm:$0xff]
    %v132 = vld [vmem:[#allocation2 + $0xc8] sm:$0xff]
    %v133 = vld [vmem:[#allocation2 + $0xd0] sm:$0xff]
    %v134 = vld [vmem:[#allocation2 + $0xd8] sm:$0xff]
    %v135 = vld [vmem:[#allocation2 + $0xe0] sm:$0xff]
    %v136 = vld [vmem:[#allocation2 + $0xe8] sm:$0xff]
    %v137 = vld [vmem:[#allocation2 + $0xf0] sm:$0xff]
    %v138 = vld [vmem:[#allocation2 + $0xf8] sm:$0xff]
    %v139 = vld [vmem:[#allocation2 + $0x100] sm:$0xff]
    %v140 = vld [vmem:[#allocation2 + $0x108] sm:$0xff]
    %v141 = vld [vmem:[#allocation2 + $0x110] sm:$0xff]
    %v142 = vld [vmem:[#allocation2 + $0x118] sm:$0xff]
    %v143 = vld [vmem:[#allocation2 + $0x120] sm:$0xff]
    %v144 = vld [vmem:[#allocation2 + $0x128] sm:$0xff]
    %v145 = vld [vmem:[#allocation2 + $0x130] sm:$0xff]
    %v146 = vld [vmem:[#allocation2 + $0x138] sm:$0xff]
    %v147 = vld [vmem:[#allocation2 + $0x140] sm:$0xff]
    %v148 = vld [vmem:[#allocation2 + $0x148] sm:$0xff]
    %v149 = vld [vmem:[#allocation2 + $0x150] sm:$0xff]
    %v150 = vld [vmem:[#allocation2 + $0x158] sm:$0xff]
    %v151 = vld [vmem:[#allocation2 + $0x160] sm:$0xff]
    %v152 = vld [vmem:[#allocation2 + $0x168] sm:$0xff]
    %v153 = vld [vmem:[#allocation2 + $0x170] sm:$0xff]
    %v154 = vld [vmem:[#allocation2 + $0x178] sm:$0xff]
    %v155 = vld [vmem:[#allocation2 + $0x180] sm:$0xff]
    %v156 = vld [vmem:[#allocation2 + $0x188] sm:$0xff]
    %v157 = vld [vmem:[#allocation2 + $0x190] sm:$0xff]
    %v158 = vld [vmem:[#allocation2 + $0x198] sm:$0xff]
    %v159 = vld [vmem:[#allocation2 + $0x1a0] sm:$0xff]
    %v160 = vld [vmem:[#allocation2 + $0x1a8] sm:$0xff]
    %v161 = vld [vmem:[#allocation2 + $0x1b0] sm:$0xff]
    %v162 = vld [vmem:[#allocation2 + $0x1b8] sm:$0xff]
    %v163 = vld [vmem:[#allocation2 + $0x1c0] sm:$0xff]
    %v164 = vld [vmem:[#allocation2 + $0x1c8] sm:$0xff]
    %v165 = vld [vmem:[#allocation2 + $0x1d0] sm:$0xff]
    %v166 = vld [vmem:[#allocation2 + $0x1d8] sm:$0xff]
    %v167 = vld [vmem:[#allocation2 + $0x1e0] sm:$0xff]
    %v168 = vld [vmem:[#allocation2 + $0x1e8] sm:$0xff]
    %v169 = vld [vmem:[#allocation2 + $0x1f0] sm:$0xff]
    %v170 = vld [vmem:[#allocation2 + $0x1f8] sm:$0xff]
    %171 = vmatprep.subr.mxu0 0.0
    %172 = vmatpush1.msra.mxu0 %v107
    %173 = vmatprep.subr.mxu0 0.0
    %174 = vmatpush1.msra.mxu0 %v108
    %175 = vmatprep.subr.mxu0 0.0
    %176 = vmatpush1.msra.mxu0 %v109
    %177 = vmatprep.subr.mxu0 0.0
    %178 = vmatpush1.msra.mxu0 %v110
    %179 = vmatprep.subr.mxu0 0.0
    %180 = vmatpush1.msra.mxu0 %v111
    %181 = vmatprep.subr.mxu0 0.0
    %182 = vmatpush1.msra.mxu0 %v112
    %183 = vmatprep.subr.mxu0 0.0
    %184 = vmatpush1.msra.mxu0 %v113
    %185 = vmatprep.subr.mxu0 0.0
    %186 = vmatpush1.msra.mxu0 %v114
    %187 = vmatprep.subr.mxu0 0.0
    %188 = vmatpush1.msra.mxu0 %v115
    %189 = vmatprep.subr.mxu0 0.0
    %190 = vmatpush1.msra.mxu0 %v116
    %191 = vmatprep.subr.mxu0 0.0
    %192 = vmatpush1.msra.mxu0 %v117
    %193 = vmatprep.subr.mxu0 0.0
    %194 = vmatpush1.msra.mxu0 %v118
    %195 = vmatprep.subr.mxu0 0.0
    %196 = vmatpush1.msra.mxu0 %v119
    %197 = vmatprep.subr.mxu0 0.0
    %198 = vmatpush1.msra.mxu0 %v120
    %199 = vmatprep.subr.mxu0 0.0
    %200 = vmatpush1.msra.mxu0 %v121
    %201 = vmatprep.subr.mxu0 0.0
    %202 = vmatpush1.msra.mxu0 %v122
    %203 = vmatprep.subr.mxu0 0.0
    %204 = vmatpush1.msra.mxu0 %v123
    %205 = vmatprep.subr.mxu0 0.0
    %206 = vmatpush1.msra.mxu0 %v124
    %207 = vmatprep.subr.mxu0 0.0
    %208 = vmatpush1.msra.mxu0 %v125
    %209 = vmatprep.subr.mxu0 0.0
    %210 = vmatpush1.msra.mxu0 %v126
    %211 = vmatprep.subr.mxu0 0.0
    %212 = vmatpush1.msra.mxu0 %v127
    %213 = vmatprep.subr.mxu0 0.0
    %214 = vmatpush1.msra.mxu0 %v128
    %215 = vmatprep.subr.mxu0 0.0
    %216 = vmatpush1.msra.mxu0 %v129
    %217 = vmatprep.subr.mxu0 0.0
    %218 = vmatpush1.msra.mxu0 %v130
    %219 = vmatprep.subr.mxu0 0.0
    %220 = vmatpush1.msra.mxu0 %v131
    %221 = vmatprep.subr.mxu0 0.0
    %222 = vmatpush1.msra.mxu0 %v132
    %223 = vmatprep.subr.mxu0 0.0
    %224 = vmatpush1.msra.mxu0 %v133
    %225 = vmatprep.subr.mxu0 0.0
    %226 = vmatpush1.msra.mxu0 %v134
    %227 = vmatprep.subr.mxu0 0.0
    %228 = vmatpush1.msra.mxu0 %v135
    %229 = vmatprep.subr.mxu0 0.0
    %230 = vmatpush1.msra.mxu0 %v136
    %231 = vmatprep.subr.mxu0 0.0
    %232 = vmatpush1.msra.mxu0 %v137
    %233 = vmatprep.subr.mxu0 0.0
    %234 = vmatpush1.msra.mxu0 %v138
    %235 = vmatprep.mubr.f32.mxu0 %v104
    %236 = vmatmul.mubr.f32.gmra.mrb[0].mxu0 %v103
    %v237 = vpop.f32.mrb[0].mxu0
    %v238 = vadd.f32 0.0, %v237
    %v239 = vpop.f32.mrb[0].mxu0
    %240 = vdwg.mxu0
    %241 = vmatprep.subr.mxu0 0.0
    %242 = vmatpush1.msra.mxu0 %v139
    %243 = vmatprep.subr.mxu0 0.0
    %244 = vmatpush1.msra.mxu0 %v140
    %245 = vmatprep.subr.mxu0 0.0
    %246 = vmatpush1.msra.mxu0 %v141
    %247 = vmatprep.subr.mxu0 0.0
    %248 = vmatpush1.msra.mxu0 %v142
    %249 = vmatprep.subr.mxu0 0.0
    %250 = vmatpush1.msra.mxu0 %v143
    %251 = vmatprep.subr.mxu0 0.0
    %252 = vmatpush1.msra.mxu0 %v144
    %253 = vmatprep.subr.mxu0 0.0
    %254 = vmatpush1.msra.mxu0 %v145
    %255 = vmatprep.subr.mxu0 0.0
    %256 = vmatpush1.msra.mxu0 %v146
    %257 = vmatprep.subr.mxu0 0.0
    %258 = vmatpush1.msra.mxu0 %v147
    %259 = vmatprep.subr.mxu0 0.0
    %260 = vmatpush1.msra.mxu0 %v148
    %261 = vmatprep.subr.mxu0 0.0
    %262 = vmatpush1.msra.mxu0 %v149
    %263 = vmatprep.subr.mxu0 0.0
    %264 = vmatpush1.msra.mxu0 %v150
    %265 = vmatprep.subr.mxu0 0.0
    %266 = vmatpush1.msra.mxu0 %v151
    %267 = vmatprep.subr.mxu0 0.0
    %268 = vmatpush1.msra.mxu0 %v152
    %269 = vmatprep.subr.mxu0 0.0
    %270 = vmatpush1.msra.mxu0 %v153
    %271 = vmatprep.subr.mxu0 0.0
    %272 = vmatpush1.msra.mxu0 %v154
    %273 = vmatprep.subr.mxu0 0.0
    %274 = vmatpush1.msra.mxu0 %v155
    %275 = vmatprep.subr.mxu0 0.0
    %276 = vmatpush1.msra.mxu0 %v156
    %277 = vmatprep.subr.mxu0 0.0
    %278 = vmatpush1.msra.mxu0 %v157
    %279 = vmatprep.subr.mxu0 0.0
    %280 = vmatpush1.msra.mxu0 %v158
    %281 = vmatprep.subr.mxu0 0.0
    %282 = vmatpush1.msra.mxu0 %v159
    %283 = vmatprep.subr.mxu0 0.0
    %284 = vmatpush1.msra.mxu0 %v160
    %285 = vmatprep.subr.mxu0 0.0
    %286 = vmatpush1.msra.mxu0 %v161
    %287 = vmatprep.subr.mxu0 0.0
    %288 = vmatpush1.msra.mxu0 %v162
    %289 = vmatprep.subr.mxu0 0.0
    %290 = vmatpush1.msra.mxu0 %v163
    %291 = vmatprep.subr.mxu0 0.0
    %292 = vmatpush1.msra.mxu0 %v164
    %293 = vmatprep.subr.mxu0 0.0
    %294 = vmatpush1.msra.mxu0 %v165
    %295 = vmatprep.subr.mxu0 0.0
    %296 = vmatpush1.msra.mxu0 %v166
    %297 = vmatprep.subr.mxu0 0.0
    %298 = vmatpush1.msra.mxu0 %v167
    %299 = vmatprep.subr.mxu0 0.0
    %300 = vmatpush1.msra.mxu0 %v168
    %301 = vmatprep.subr.mxu0 0.0
    %302 = vmatpush1.msra.mxu0 %v169
    %303 = vmatprep.subr.mxu0 0.0
    %304 = vmatpush1.msra.mxu0 %v170
    %305 = vmatprep.mubr.f32.mxu0 %v106
    %306 = vmatmul.mubr.f32.gmra.mrb[0].mxu0 %v105
    %v307 = vpop.f32.mrb[0].mxu0
    %v308 = vadd.f32 %v238, %v307
    %v309 = vpop.f32.mrb[0].mxu0
    %310 = vdwg.mxu0
    %v311 = vld [vmem:[%s3] sm:$0x3]
    %313 = vset.pattern.permute.xlu0 0
    %314 = vperm.xlu0 %313, %v85
    %v315 = vpop.permute.xlu0 %314
    %v317 = vlaneseq
    %v318 = vshrl.u32 %v317, 7
    %v319 = vsub.s32 0, %v318
    %v320 = vrot.slane %v311, %v319
    %v321 = vmul.f32 %v315, %v320
    %322 = vset.pattern.permute.xlu0 1
    %323 = vperm.xlu0 %322, %v85
    %v324 = vpop.permute.xlu0 %323
    %v326 = vlaneseq
    %v327 = vshrl.u32 %v326, 7
    %v328 = vsub.s32 1, %v327
    %v329 = vrot.slane %v311, %v328
    %v330 = vmul.f32 %v324, %v329
    %v331 = vadd.f32 %v321, %v330
    %v332 = vld [vmem:[%s4] sm:$0x1]
    %v334 = vlaneseq
    %v335 = vshrl.u32 %v334, 7
    %v336 = vsub.s32 0, %v335
    %v337 = vrot.slane %v332, %v336
    %v339 = vadd.f32 %v331, %v337
    %v340 = vadd.f32 %v339, %v308
    %v341 = vld [vmem:[#allocation4] sm:$0xff]
    %v342 = vld [vmem:[#allocation4 + $0x8] sm:$0xff]
    %v343 = vld [vmem:[#allocation4 + $0x10] sm:$0xff]
    %v344 = vld [vmem:[#allocation4 + $0x18] sm:$0xff]
    %v345 = vld [vmem:[#allocation4 + $0x20] sm:$0xff]
    %v346 = vld [vmem:[#allocation4 + $0x28] sm:$0xff]
    %v347 = vld [vmem:[#allocation4 + $0x30] sm:$0xff]
    %v348 = vld [vmem:[#allocation4 + $0x38] sm:$0xff]
    %v349 = vld [vmem:[#allocation4 + $0x40] sm:$0xff]
    %v350 = vld [vmem:[#allocation4 + $0x48] sm:$0xff]
    %v351 = vld [vmem:[#allocation4 + $0x50] sm:$0xff]
    %v352 = vld [vmem:[#allocation4 + $0x58] sm:$0xff]
    %v353 = vld [vmem:[#allocation4 + $0x60] sm:$0xff]
    %v354 = vld [vmem:[#allocation4 + $0x68] sm:$0xff]
    %v355 = vld [vmem:[#allocation4 + $0x70] sm:$0xff]
    %v356 = vld [vmem:[#allocation4 + $0x78] sm:$0xff]
    %v357 = vld [vmem:[%s6] sm:$0x1]
    %v359 = vlaneseq
    %v360 = vshrl.u32 %v359, 7
    %v361 = vsub.s32 0, %v360
    %v362 = vrot.slane %v357, %v361
    %364 = vmatprep.subr.mxu0 0.0
    %365 = vmatpush1.msra.mxu0 %v341
    %366 = vmatprep.subr.mxu0 0.0
    %367 = vmatpush1.msra.mxu0 %v342
    %368 = vmatprep.subr.mxu0 0.0
    %369 = vmatpush1.msra.mxu0 %v343
    %370 = vmatprep.subr.mxu0 0.0
    %371 = vmatpush1.msra.mxu0 %v344
    %372 = vmatprep.subr.mxu0 0.0
    %373 = vmatpush1.msra.mxu0 %v345
    %374 = vmatprep.subr.mxu0 0.0
    %375 = vmatpush1.msra.mxu0 %v346
    %376 = vmatprep.subr.mxu0 0.0
    %377 = vmatpush1.msra.mxu0 %v347
    %378 = vmatprep.subr.mxu0 0.0
    %379 = vmatpush1.msra.mxu0 %v348
    %380 = vmatprep.subr.mxu0 0.0
    %381 = vmatpush1.msra.mxu0 %v349
    %382 = vmatprep.subr.mxu0 0.0
    %383 = vmatpush1.msra.mxu0 %v350
    %384 = vmatprep.subr.mxu0 0.0
    %385 = vmatpush1.msra.mxu0 %v351
    %386 = vmatprep.subr.mxu0 0.0
    %387 = vmatpush1.msra.mxu0 %v352
    %388 = vmatprep.subr.mxu0 0.0
    %389 = vmatpush1.msra.mxu0 %v353
    %390 = vmatprep.subr.mxu0 0.0
    %391 = vmatpush1.msra.mxu0 %v354
    %392 = vmatprep.subr.mxu0 0.0
    %393 = vmatpush1.msra.mxu0 %v355
    %394 = vmatprep.subr.mxu0 0.0
    %395 = vmatpush1.msra.mxu0 %v356
    %396 = vmatprep.subr.mxu0 0.0
    %397 = vmatpush1.msra.mxu0 0.0
    %398 = vmatprep.subr.mxu0 0.0
    %399 = vmatpush1.msra.mxu0 0.0
    %400 = vmatprep.subr.mxu0 0.0
    %401 = vmatpush1.msra.mxu0 0.0
    %402 = vmatprep.subr.mxu0 0.0
    %403 = vmatpush1.msra.mxu0 0.0
    %404 = vmatprep.subr.mxu0 0.0
    %405 = vmatpush1.msra.mxu0 0.0
    %406 = vmatprep.subr.mxu0 0.0
    %407 = vmatpush1.msra.mxu0 0.0
    %408 = vmatprep.subr.mxu0 0.0
    %409 = vmatpush1.msra.mxu0 0.0
    %410 = vmatprep.subr.mxu0 0.0
    %411 = vmatpush1.msra.mxu0 0.0
    %412 = vmatprep.subr.mxu0 0.0
    %413 = vmatpush1.msra.mxu0 0.0
    %414 = vmatprep.subr.mxu0 0.0
    %415 = vmatpush1.msra.mxu0 0.0
    %416 = vmatprep.subr.mxu0 0.0
    %417 = vmatpush1.msra.mxu0 0.0
    %418 = vmatprep.subr.mxu0 0.0
    %419 = vmatpush1.msra.mxu0 0.0
    %420 = vmatprep.subr.mxu0 0.0
    %421 = vmatpush1.msra.mxu0 0.0
    %422 = vmatprep.subr.mxu0 0.0
    %423 = vmatpush1.msra.mxu0 0.0
    %424 = vmatprep.subr.mxu0 0.0
    %425 = vmatpush1.msra.mxu0 0.0
    %426 = vmatprep.subr.mxu0 0.0
    %427 = vmatpush1.msra.mxu0 0.0
    %428 = vmatprep.mubr.f32.mxu0 0.0
    %429 = vmatmul.mubr.f32.gmra.mrb[0].mxu0 %v340
    %v430 = vpop.f32.mrb[0].mxu0
    %v431 = vadd.f32 %v362, %v430
    %v432 = vpop.f32.mrb[0].mxu0
    %433 = vdwg.mxu0
    %v434 = vmul.f32 %v431, 0.5
    %v435 = vmul.f32 %v431, 0.70710677
    %vm436 = vcmp.ge.f32.partialorder %v435, 0.0
    %v437 = vsel %vm436, 1.0, -1.0
    %v438 = vand.u32 2147483647, %v435
    %v439 = vmul.f32 %v438, 0.3275911
    %v440 = vadd.f32 %v439, 1.0
    %v441 = vrcp.pop %v440
    %v442 = vmul.f32 1.0, %v441
    %v443 = vmul.f32 %v442, 1.0614054
    %v444 = vadd.f32 %v443, -1.4531521
    %v445 = vmul.f32 %v444, %v442
    %v446 = vadd.f32 %v445, 1.4214138
    %v447 = vmul.f32 %v446, %v442
    %v448 = vadd.f32 %v447, -0.28449672
    %v449 = vmul.f32 %v448, %v442
    %v450 = vadd.f32 %v449, 0.2548296
    %v451 = vmul.f32 %v450, %v442
    %v452 = vsub.f32 0.0, %v438
    %v453 = vmul.f32 %v452, %v438
    %v454 = vmul.f32 %v453, 1.442695
    %v455 = vpow.pop %v454
    %v456 = vmul.f32 %v451, %v455
    %v457 = vsub.f32 1.0, %v456
    %v458 = vmul.f32 %v437, %v457
    %v459 = vadd.f32 %v458, 1.0
    %v460 = vmul.f32 %v434, %v459
    %v461 = vld [vmem:[#allocation6] sm:$0xff]
    %v462 = vld [vmem:[#allocation6 + $0x8] sm:$0xff]
    %v463 = vld [vmem:[#allocation6 + $0x10] sm:$0xff]
    %v464 = vld [vmem:[#allocation6 + $0x18] sm:$0xff]
    %v465 = vld [vmem:[#allocation6 + $0x20] sm:$0xff]
    %v466 = vld [vmem:[#allocation6 + $0x28] sm:$0xff]
    %v467 = vld [vmem:[#allocation6 + $0x30] sm:$0xff]
    %v468 = vld [vmem:[#allocation6 + $0x38] sm:$0xff]
    %v469 = vld [vmem:[#allocation6 + $0x40] sm:$0xff]
    %v470 = vld [vmem:[#allocation6 + $0x48] sm:$0xff]
    %v471 = vld [vmem:[#allocation6 + $0x50] sm:$0xff]
    %v472 = vld [vmem:[#allocation6 + $0x58] sm:$0xff]
    %v473 = vld [vmem:[#allocation6 + $0x60] sm:$0xff]
    %v474 = vld [vmem:[#allocation6 + $0x68] sm:$0xff]
    %v475 = vld [vmem:[#allocation6 + $0x70] sm:$0xff]
    %v476 = vld [vmem:[#allocation6 + $0x78] sm:$0xff]
    %477 = vmatprep.subr.mxu0 0.0
    %478 = vmatpush1.msra.mxu0 %v461
    %479 = vmatprep.subr.mxu0 0.0
    %480 = vmatpush1.msra.mxu0 %v462
    %481 = vmatprep.subr.mxu0 0.0
    %482 = vmatpush1.msra.mxu0 %v463
    %483 = vmatprep.subr.mxu0 0.0
    %484 = vmatpush1.msra.mxu0 %v464
    %485 = vmatprep.subr.mxu0 0.0
    %486 = vmatpush1.msra.mxu0 %v465
    %487 = vmatprep.subr.mxu0 0.0
    %488 = vmatpush1.msra.mxu0 %v466
    %489 = vmatprep.subr.mxu0 0.0
    %490 = vmatpush1.msra.mxu0 %v467
    %491 = vmatprep.subr.mxu0 0.0
    %492 = vmatpush1.msra.mxu0 %v468
    %493 = vmatprep.subr.mxu0 0.0
    %494 = vmatpush1.msra.mxu0 %v469
    %495 = vmatprep.subr.mxu0 0.0
    %496 = vmatpush1.msra.mxu0 %v470
    %497 = vmatprep.subr.mxu0 0.0
    %498 = vmatpush1.msra.mxu0 %v471
    %499 = vmatprep.subr.mxu0 0.0
    %500 = vmatpush1.msra.mxu0 %v472
    %501 = vmatprep.subr.mxu0 0.0
    %502 = vmatpush1.msra.mxu0 %v473
    %503 = vmatprep.subr.mxu0 0.0
    %504 = vmatpush1.msra.mxu0 %v474
    %505 = vmatprep.subr.mxu0 0.0
    %506 = vmatpush1.msra.mxu0 %v475
    %507 = vmatprep.subr.mxu0 0.0
    %508 = vmatpush1.msra.mxu0 %v476
    %509 = vmatprep.subr.mxu0 0.0
    %510 = vmatpush1.msra.mxu0 0.0
    %511 = vmatprep.subr.mxu0 0.0
    %512 = vmatpush1.msra.mxu0 0.0
    %513 = vmatprep.subr.mxu0 0.0
    %514 = vmatpush1.msra.mxu0 0.0
    %515 = vmatprep.subr.mxu0 0.0
    %516 = vmatpush1.msra.mxu0 0.0
    %517 = vmatprep.subr.mxu0 0.0
    %518 = vmatpush1.msra.mxu0 0.0
    %519 = vmatprep.subr.mxu0 0.0
    %520 = vmatpush1.msra.mxu0 0.0
    %521 = vmatprep.subr.mxu0 0.0
    %522 = vmatpush1.msra.mxu0 0.0
    %523 = vmatprep.subr.mxu0 0.0
    %524 = vmatpush1.msra.mxu0 0.0
    %525 = vmatprep.subr.mxu0 0.0
    %526 = vmatpush1.msra.mxu0 0.0
    %527 = vmatprep.subr.mxu0 0.0
    %528 = vmatpush1.msra.mxu0 0.0
    %529 = vmatprep.subr.mxu0 0.0
    %530 = vmatpush1.msra.mxu0 0.0
    %531 = vmatprep.subr.mxu0 0.0
    %532 = vmatpush1.msra.mxu0 0.0
    %533 = vmatprep.subr.mxu0 0.0
    %534 = vmatpush1.msra.mxu0 0.0
    %535 = vmatprep.subr.mxu0 0.0
    %536 = vmatpush1.msra.mxu0 0.0
    %537 = vmatprep.subr.mxu0 0.0
    %538 = vmatpush1.msra.mxu0 0.0
    %539 = vmatprep.subr.mxu0 0.0
    %540 = vmatpush1.msra.mxu0 0.0
    %541 = vmatprep.mubr.f32.mxu0 0.0
    %542 = vmatmul.mubr.f32.gmra.mrb[0].mxu0 %v460
    %v543 = vpop.f32.mrb[0].mxu0
    %v544 = vadd.f32 0.0, %v543
    %v545 = vpop.f32.mrb[0].mxu0
    %546 = vdwg.mxu0
    %v547 = vadd.f32 %v339, %v544
    %v548 = vld [vmem:[%s8] sm:$0x1]
    %v550 = vlaneseq
    %v551 = vshrl.u32 %v550, 7
    %v552 = vsub.s32 0, %v551
    %v553 = vrot.slane %v548, %v552
    %v555 = vadd.f32 %v547, %v553
    %556 = vadd.xlane.f32.xlu0 %v555
    %v557 = vpop.xlane.xlu0 %556
    %v558 = vrcp.pop 128.0
    %v559 = vmul.f32 %v557, %v558
    %v560 = vsub.f32 %v555, %v559
    %v561 = vmul.f32 %v560, %v560
    %562 = vadd.xlane.f32.xlu0 %v561
    %v563 = vpop.xlane.xlu0 %562
    %v564 = vmul.f32 %v563, %v558
    %v565 = vadd.f32 %v564, 1e-05
    %v566 = vrsqrt.pop %v565
    %v567 = vmul.f32 %v560, %v566
    %v568 = vld [vmem:[%s9] sm:$0x1]
    %v570 = vlaneseq
    %v571 = vshrl.u32 %v570, 7
    %v572 = vsub.s32 0, %v571
    %v573 = vrot.slane %v568, %v572
    %v575 = vmul.f32 %v567, %v573
    %v576 = vld [vmem:[%s10] sm:$0x1]
    %v578 = vlaneseq
    %v579 = vshrl.u32 %v578, 7
    %v580 = vsub.s32 0, %v579
    %v581 = vrot.slane %v576, %v580
    %v583 = vadd.f32 %v575, %v581
    %v584 = vadd.f32 %v583, %v308
    %s585 = scalar_lea.vmem [#allocation4], 128
    %v586 = vld [vmem:[%s585] sm:$0xff]
    %v587 = vld [vmem:[%s585 + $0x8] sm:$0xff]
    %v588 = vld [vmem:[%s585 + $0x10] sm:$0xff]
    %v589 = vld [vmem:[%s585 + $0x18] sm:$0xff]
    %v590 = vld [vmem:[%s585 + $0x20] sm:$0xff]
    %v591 = vld [vmem:[%s585 + $0x28] sm:$0xff]
    %v592 = vld [vmem:[%s585 + $0x30] sm:$0xff]
    %v593 = vld [vmem:[%s585 + $0x38] sm:$0xff]
    %v594 = vld [vmem:[%s585 + $0x40] sm:$0xff]
    %v595 = vld [vmem:[%s585 + $0x48] sm:$0xff]
    %v596 = vld [vmem:[%s585 + $0x50] sm:$0xff]
    %v597 = vld [vmem:[%s585 + $0x58] sm:$0xff]
    %v598 = vld [vmem:[%s585 + $0x60] sm:$0xff]
    %v599 = vld [vmem:[%s585 + $0x68] sm:$0xff]
    %v600 = vld [vmem:[%s585 + $0x70] sm:$0xff]
    %v601 = vld [vmem:[%s585 + $0x78] sm:$0xff]
    %s602 = scalar_lea.vmem %s6, 1
    %v603 = vld [vmem:[%s602] sm:$0x1]
    %v605 = vlaneseq
    %v606 = vshrl.u32 %v605, 7
    %v607 = vsub.s32 0, %v606
    %v608 = vrot.slane %v603, %v607
    %610 = vmatprep.subr.mxu0 0.0
    %611 = vmatpush1.msra.mxu0 %v586
    %612 = vmatprep.subr.mxu0 0.0
    %613 = vmatpush1.msra.mxu0 %v587
    %614 = vmatprep.subr.mxu0 0.0
    %615 = vmatpush1.msra.mxu0 %v588
    %616 = vmatprep.subr.mxu0 0.0
    %617 = vmatpush1.msra.mxu0 %v589
    %618 = vmatprep.subr.mxu0 0.0
    %619 = vmatpush1.msra.mxu0 %v590
    %620 = vmatprep.subr.mxu0 0.0
    %621 = vmatpush1.msra.mxu0 %v591
    %622 = vmatprep.subr.mxu0 0.0
    %623 = vmatpush1.msra.mxu0 %v592
    %624 = vmatprep.subr.mxu0 0.0
    %625 = vmatpush1.msra.mxu0 %v593
    %626 = vmatprep.subr.mxu0 0.0
    %627 = vmatpush1.msra.mxu0 %v594
    %628 = vmatprep.subr.mxu0 0.0
    %629 = vmatpush1.msra.mxu0 %v595
    %630 = vmatprep.subr.mxu0 0.0
    %631 = vmatpush1.msra.mxu0 %v596
    %632 = vmatprep.subr.mxu0 0.0
    %633 = vmatpush1.msra.mxu0 %v597
    %634 = vmatprep.subr.mxu0 0.0
    %635 = vmatpush1.msra.mxu0 %v598
    %636 = vmatprep.subr.mxu0 0.0
    %637 = vmatpush1.msra.mxu0 %v599
    %638 = vmatprep.subr.mxu0 0.0
    %639 = vmatpush1.msra.mxu0 %v600
    %640 = vmatprep.subr.mxu0 0.0
    %641 = vmatpush1.msra.mxu0 %v601
    %642 = vmatprep.subr.mxu0 0.0
    %643 = vmatpush1.msra.mxu0 0.0
    %644 = vmatprep.subr.mxu0 0.0
    %645 = vmatpush1.msra.mxu0 0.0
    %646 = vmatprep.subr.mxu0 0.0
    %647 = vmatpush1.msra.mxu0 0.0
    %648 = vmatprep.subr.mxu0 0.0
    %649 = vmatpush1.msra.mxu0 0.0
    %650 = vmatprep.subr.mxu0 0.0
    %651 = vmatpush1.msra.mxu0 0.0
    %652 = vmatprep.subr.mxu0 0.0
    %653 = vmatpush1.msra.mxu0 0.0
    %654 = vmatprep.subr.mxu0 0.0
    %655 = vmatpush1.msra.mxu0 0.0
    %656 = vmatprep.subr.mxu0 0.0
    %657 = vmatpush1.msra.mxu0 0.0
    %658 = vmatprep.subr.mxu0 0.0
    %659 = vmatpush1.msra.mxu0 0.0
    %660 = vmatprep.subr.mxu0 0.0
    %661 = vmatpush1.msra.mxu0 0.0
    %662 = vmatprep.subr.mxu0 0.0
    %663 = vmatpush1.msra.mxu0 0.0
    %664 = vmatprep.subr.mxu0 0.0
    %665 = vmatpush1.msra.mxu0 0.0
    %666 = vmatprep.subr.mxu0 0.0
    %667 = vmatpush1.msra.mxu0 0.0
    %668 = vmatprep.subr.mxu0 0.0
    %669 = vmatpush1.msra.mxu0 0.0
    %670 = vmatprep.subr.mxu0 0.0
    %671 = vmatpush1.msra.mxu0 0.0
    %672 = vmatprep.subr.mxu0 0.0
    %673 = vmatpush1.msra.mxu0 0.0
    %674 = vmatprep.mubr.f32.mxu0 0.0
    %675 = vmatmul.mubr.f32.gmra.mrb[0].mxu0 %v584
    %v676 = vpop.f32.mrb[0].mxu0
    %v677 = vadd.f32 %v608, %v676
    %v678 = vpop.f32.mrb[0].mxu0
    %679 = vdwg.mxu0
    %v680 = vmul.f32 %v677, 0.5
    %v681 = vmul.f32 %v677, 0.70710677
    %vm682 = vcmp.ge.f32.partialorder %v681, 0.0
    %v683 = vsel %vm682, 1.0, -1.0
    %v684 = vand.u32 2147483647, %v681
    %v685 = vmul.f32 %v684, 0.3275911
    %v686 = vadd.f32 %v685, 1.0
    %v687 = vrcp.pop %v686
    %v688 = vmul.f32 1.0, %v687
    %v689 = vmul.f32 %v688, 1.0614054
    %v690 = vadd.f32 %v689, -1.4531521
    %v691 = vmul.f32 %v690, %v688
    %v692 = vadd.f32 %v691, 1.4214138
    %v693 = vmul.f32 %v692, %v688
    %v694 = vadd.f32 %v693, -0.28449672
    %v695 = vmul.f32 %v694, %v688
    %v696 = vadd.f32 %v695, 0.2548296
    %v697 = vmul.f32 %v696, %v688
    %v698 = vsub.f32 0.0, %v684
    %v699 = vmul.f32 %v698, %v684
    %v700 = vmul.f32 %v699, 1.442695
    %v701 = vpow.pop %v700
    %v702 = vmul.f32 %v697, %v701
    %v703 = vsub.f32 1.0, %v702
    %v704 = vmul.f32 %v683, %v703
    %v705 = vadd.f32 %v704, 1.0
    %v706 = vmul.f32 %v680, %v705
    %s707 = scalar_lea.vmem [#allocation6], 128
    %v708 = vld [vmem:[%s707] sm:$0xff]
    %v709 = vld [vmem:[%s707 + $0x8] sm:$0xff]
    %v710 = vld [vmem:[%s707 + $0x10] sm:$0xff]
    %v711 = vld [vmem:[%s707 + $0x18] sm:$0xff]
    %v712 = vld [vmem:[%s707 + $0x20] sm:$0xff]
    %v713 = vld [vmem:[%s707 + $0x28] sm:$0xff]
    %v714 = vld [vmem:[%s707 + $0x30] sm:$0xff]
    %v715 = vld [vmem:[%s707 + $0x38] sm:$0xff]
    %v716 = vld [vmem:[%s707 + $0x40] sm:$0xff]
    %v717 = vld [vmem:[%s707 + $0x48] sm:$0xff]
    %v718 = vld [vmem:[%s707 + $0x50] sm:$0xff]
    %v719 = vld [vmem:[%s707 + $0x58] sm:$0xff]
    %v720 = vld [vmem:[%s707 + $0x60] sm:$0xff]
    %v721 = vld [vmem:[%s707 + $0x68] sm:$0xff]
    %v722 = vld [vmem:[%s707 + $0x70] sm:$0xff]
    %v723 = vld [vmem:[%s707 + $0x78] sm:$0xff]
    %724 = vmatprep.subr.mxu0 0.0
    %725 = vmatpush1.msra.mxu0 %v708
    %726 = vmatprep.subr.mxu0 0.0
    %727 = vmatpush1.msra.mxu0 %v709
    %728 = vmatprep.subr.mxu0 0.0
    %729 = vmatpush1.msra.mxu0 %v710
    %730 = vmatprep.subr.mxu0 0.0
    %731 = vmatpush1.msra.mxu0 %v711
    %732 = vmatprep.subr.mxu0 0.0
    %733 = vmatpush1.msra.mxu0 %v712
    %734 = vmatprep.subr.mxu0 0.0
    %735 = vmatpush1.msra.mxu0 %v713
    %736 = vmatprep.subr.mxu0 0.0
    %737 = vmatpush1.msra.mxu0 %v714
    %738 = vmatprep.subr.mxu0 0.0
    %739 = vmatpush1.msra.mxu0 %v715
    %740 = vmatprep.subr.mxu0 0.0
    %741 = vmatpush1.msra.mxu0 %v716
    %742 = vmatprep.subr.mxu0 0.0
    %743 = vmatpush1.msra.mxu0 %v717
    %744 = vmatprep.subr.mxu0 0.0
    %745 = vmatpush1.msra.mxu0 %v718
    %746 = vmatprep.subr.mxu0 0.0
    %747 = vmatpush1.msra.mxu0 %v719
    %748 = vmatprep.subr.mxu0 0.0
    %749 = vmatpush1.msra.mxu0 %v720
    %750 = vmatprep.subr.mxu0 0.0
    %751 = vmatpush1.msra.mxu0 %v721
    %752 = vmatprep.subr.mxu0 0.0
    %753 = vmatpush1.msra.mxu0 %v722
    %754 = vmatprep.subr.mxu0 0.0
    %755 = vmatpush1.msra.mxu0 %v723
    %756 = vmatprep.subr.mxu0 0.0
    %757 = vmatpush1.msra.mxu0 0.0
    %758 = vmatprep.subr.mxu0 0.0
    %759 = vmatpush1.msra.mxu0 0.0
    %760 = vmatprep.subr.mxu0 0.0
    %761 = vmatpush1.msra.mxu0 0.0
    %762 = vmatprep.subr.mxu0 0.0
    %763 = vmatpush1.msra.mxu0 0.0
    %764 = vmatprep.subr.mxu0 0.0
    %765 = vmatpush1.msra.mxu0 0.0
    %766 = vmatprep.subr.mxu0 0.0
    %767 = vmatpush1.msra.mxu0 0.0
    %768 = vmatprep.subr.mxu0 0.0
    %769 = vmatpush1.msra.mxu0 0.0
    %770 = vmatprep.subr.mxu0 0.0
    %771 = vmatpush1.msra.mxu0 0.0
    %772 = vmatprep.subr.mxu0 0.0
    %773 = vmatpush1.msra.mxu0 0.0
    %774 = vmatprep.subr.mxu0 0.0
    %775 = vmatpush1.msra.mxu0 0.0
    %776 = vmatprep.subr.mxu0 0.0
    %777 = vmatpush1.msra.mxu0 0.0
    %778 = vmatprep.subr.mxu0 0.0
    %779 = vmatpush1.msra.mxu0 0.0
    %780 = vmatprep.subr.mxu0 0.0
    %781 = vmatpush1.msra.mxu0 0.0
    %782 = vmatprep.subr.mxu0 0.0
    %783 = vmatpush1.msra.mxu0 0.0
    %784 = vmatprep.subr.mxu0 0.0
    %785 = vmatpush1.msra.mxu0 0.0
    %786 = vmatprep.subr.mxu0 0.0
    %787 = vmatpush1.msra.mxu0 0.0
    %788 = vmatprep.mubr.f32.mxu0 0.0
    %789 = vmatmul.mubr.f32.gmra.mrb[0].mxu0 %v706
    %v790 = vpop.f32.mrb[0].mxu0
    %v791 = vadd.f32 0.0, %v790
    %v792 = vpop.f32.mrb[0].mxu0
    %793 = vdwg.mxu0
    %v794 = vadd.f32 %v583, %v791
    %s795 = scalar_lea.vmem %s8, 1
    %v796 = vld [vmem:[%s795] sm:$0x1]
    %v798 = vlaneseq
    %v799 = vshrl.u32 %v798, 7
    %v800 = vsub.s32 0, %v799
    %v801 = vrot.slane %v796, %v800
    %v803 = vadd.f32 %v794, %v801
    %804 = vadd.xlane.f32.xlu0 %v803
    %v805 = vpop.xlane.xlu0 %804
    %v806 = vmul.f32 %v805, %v558
    %v807 = vsub.f32 %v803, %v806
    %v808 = vmul.f32 %v807, %v807
    %809 = vadd.xlane.f32.xlu0 %v808
    %v810 = vpop.xlane.xlu0 %809
    %v811 = vmul.f32 %v810, %v558
    %v812 = vadd.f32 %v811, 1e-05
    %v813 = vrsqrt.pop %v812
    %v814 = vmul.f32 %v807, %v813
    %s815 = scalar_lea.vmem %s9, 1
    %v816 = vld [vmem:[%s815] sm:$0x1]
    %v818 = vlaneseq
    %v819 = vshrl.u32 %v818, 7
    %v820 = vsub.s32 0, %v819
    %v821 = vrot.slane %v816, %v820
    %v823 = vmul.f32 %v814, %v821
    %s824 = scalar_lea.vmem %s10, 1
    %v825 = vld [vmem:[%s824] sm:$0x1]
    %v827 = vlaneseq
    %v828 = vshrl.u32 %v827, 7
    %v829 = vsub.s32 0, %v828
    %v830 = vrot.slane %v825, %v829
    %v832 = vadd.f32 %v823, %v830
    %v833 = vld [vmem:[%s11] sm:$0x3]
    %v834 = vld [vmem:[%s12] sm:$0x1]
    %v835 = vlaneseq
    %v836 = vshrl.u32 %v835, 7
    %v837 = vsub.s32 0, %v836
    %v838 = vrot.slane %v833, %v837
    %v839 = vmul.f32 %v832, %v838
    %840 = vadd.xlane.f32.xlu0 %v839
    %v841 = vpop.xlane.xlu0 %840
    %v843 = vlaneseq
    %v844 = vshrl.u32 %v843, 7
    %v845 = vsub.s32 0, %v844
    %v846 = vrot.slane %v834, %v845
    %v848 = vadd.f32 %v841, %v846
    %v849 = vlaneseq
    %v850 = vshrl.u32 %v849, 7
    %v851 = vsub.s32 1, %v850
    %v852 = vrot.slane %v833, %v851
    %v853 = vmul.f32 %v832, %v852
    %854 = vadd.xlane.f32.xlu0 %v853
    %v855 = vpop.xlane.xlu0 %854
    %v856 = vadd.f32 %v855, %v846
    %vm857 = vcmask 7168
    %858 = vst.msk [vmem:[%s13] sm:$0xff] %vm857, %v848
    %vm859 = vcmask 15368
    %860 = vst.msk [vmem:[%s13] sm:$0xff] %vm859, %v856
    // Predicated region
    $region66: #{basic_discrete_time_model.1} parent=1 // pred_check
      _
    $region67: #{basic_discrete_time_model.1} parent=1 // pred_check_branch
      %862 = sbr.rel (0) target = $region69
    $region68: #{basic_discrete_time_model.1} parent=1 // pred_region
      _
    $region69: #{basic_discrete_time_model.1} parent=1 // pred_fallthru
      _
    // Predicated region
    $region70: #{basic_discrete_time_model.1} parent=1 // pred_check
      _
    $region71: #{basic_discrete_time_model.1} parent=1 // pred_check_branch
      %864 = sbr.rel (0) target = $region73
    $region72: #{basic_discrete_time_model.1} parent=1 // pred_region
      _
    $region73: #{basic_discrete_time_model.1} parent=1 // pred_fallthru
      _
    %865 = vsyncpa [#allocation3], 1
    %866 = vsyncpa [#allocation5], 1

</llo_original>
